<compile_context>
chip_gen: v7x
topology: tpu7x:2x2x1
jax: 0.10.0
libtpu: 0.0.40
codegen_flags: <defaults>
</compile_context>

<pallas_src>
import math
from functools import partial

import jax
import jax.numpy as jnp
from jax.experimental import pallas as pl
from jax.experimental.pallas import tpu as pltpu


# ---------------------------------------------------------------------------
# PositionEncoder.__init__ equivalent: sinusoidal pe table (one-time setup)
# ---------------------------------------------------------------------------
def make_pe(d_model: int, length: int, n: float = 10000.0) -> jnp.ndarray:
    position = jnp.arange(length, dtype=jnp.float32)[:, None]                 # (L, 1)
    denominator = jnp.exp(
        jnp.arange(0, d_model, 2, dtype=jnp.float32) * (-math.log(n) / d_model)
    )                                                                          # (ceil(D/2),)
    pe = jnp.zeros((length, 1, d_model), dtype=jnp.float32)
    pe = pe.at[:, 0, 0::2].set(jnp.sin(position * denominator))
    if d_model % 2 != 0:
        pe = pe.at[:, 0, 1::2].set(jnp.cos(position * denominator[:-1]))
    else:
        pe = pe.at[:, 0, 1::2].set(jnp.cos(position * denominator))
    return pe


_VMEM_SPEC = pl.BlockSpec(memory_space=pltpu.MemorySpace.VMEM)


# ---------------------------------------------------------------------------
# Pallas kernel 1: positional-encoding add (batch_first layout, whole-array block)
#   out[b, s, d] = x[b, s, d] + pe[s, d]
# ---------------------------------------------------------------------------
def _pe_add_kernel(x_ref, pe_ref, o_ref):
    o_ref[...] = x_ref[...] + pe_ref[...][None, :, :]      # pure VPU add


def position_encoder_forward(x, pe):
    """x: (B, S, D) (batch_first=True, as ModelConcat uses); pe: (L, 1, D), L >= S."""
    B, S, D = x.shape
    pe_sd = pe[:S, 0, :].astype(x.dtype)                   # (S, D), cast once
    return pl.pallas_call(
        _pe_add_kernel,
        out_shape=jax.ShapeDtypeStruct((B, S, D), x.dtype),
        in_specs=[_VMEM_SPEC, _VMEM_SPEC],
        out_specs=_VMEM_SPEC,
    )(x, pe_sd)


# ---------------------------------------------------------------------------
# Pallas kernel 2: fully-fused dense head
#   linear_pattern + linear_sequence -> concat -> (folded fc_bn) -> fc stack
#   -> output Linear -> LogSoftmax, all in one kernel, intermediates in VMEM.
# ---------------------------------------------------------------------------
def _fused_head_kernel(p_ref, s_ref,
                       wp_ref, bp_ref, ws_ref, bs_ref,
                       w0_ref, b0_ref, w1_ref, b1_ref,
                       w2_ref, b2_ref, w3_ref, b3_ref,
                       wo_ref, bo_ref,
                       o_ref, emb_ref, *, negative_slope):
    def lrelu(v):
        return jnp.where(v >= 0, v, negative_slope * v)

    def dense(x, w_ref, b_ref):
        return jnp.dot(x, w_ref[...], preferred_element_type=jnp.float32) + b_ref[...]

    H = wp_ref.shape[1]

    yp = lrelu(dense(p_ref[...], wp_ref, bp_ref))          # (B, H)   linear_pattern
    ys = lrelu(dense(s_ref[...], ws_ref, bs_ref))          # (B, H)   linear_sequence

    # "free" concat: write both branch outputs into adjacent columns of a
    # lane-dense (B, 2H) VMEM scratch (2H = 128 for the default hidden=64).
    emb_ref[:, 0:H] = yp
    emb_ref[:, H:2 * H] = ys
    h = emb_ref[...]                                       # (B, 2H)

    h = lrelu(dense(h, w0_ref, b0_ref))                    # (B, 1024)  fc_bn folded in
    h = lrelu(dense(h, w1_ref, b1_ref))                    # (B, 256)
    h = lrelu(dense(h, w2_ref, b2_ref))                    # (B, 64)
    h = lrelu(dense(h, w3_ref, b3_ref))                    # (B, 32)
    y = dense(h, wo_ref, bo_ref)                           # (B, 14)

    # Numerically stable log_softmax over the (untiled) last dim.
    m = jnp.max(y, axis=-1, keepdims=True)
    z = y - m
    o_ref[...] = (z - jnp.log(jnp.sum(jnp.exp(z), axis=-1, keepdims=True))).astype(o_ref.dtype)


def fused_head(p_flat, s_flat, params, *, negative_slope=0.01, eps=1e-5):
    """p_flat: (B, 14*E), s_flat: (B, 200*E). One pallas_call for the whole head."""
    lp, ls = params["lin_pattern"], params["lin_sequence"]
    fc, out, bn = params["fc"], params["out"], params["fc_bn"]
    B = p_flat.shape[0]
    H = lp["w"].shape[1]
    N = out["w"].shape[1]

    # Fold eval-mode BatchNorm1d into the first fc layer:
    #   bn(x) @ w0 + b0 = x @ (scale[:,None]*w0) + (beta - mean*scale) @ w0 + b0
    scale = bn["gamma"] * jax.lax.rsqrt(bn["var"] + eps)
    shift = bn["beta"] - bn["mean"] * scale
    w0 = fc[0]["w"] * scale[:, None]
    b0 = fc[0]["b"] + shift @ fc[0]["w"]

    flat = [lp["w"], lp["b"], ls["w"], ls["b"],
            w0, b0, fc[1]["w"], fc[1]["b"],
            fc[2]["w"], fc[2]["b"], fc[3]["w"], fc[3]["b"],
            out["w"], out["b"]]
    args = [a.reshape(1, -1) if a.ndim == 1 else a for a in flat]   # biases -> (1, N)

    return pl.pallas_call(
        partial(_fused_head_kernel, negative_slope=negative_slope),
        out_shape=jax.ShapeDtypeStruct((B, N), p_flat.dtype),
        in_specs=[_VMEM_SPEC] * (2 + len(args)),
        out_specs=_VMEM_SPEC,
        scratch_shapes=[pltpu.VMEM((B, 2 * H), jnp.float32)],
    )(p_flat, s_flat, *args)


# ---------------------------------------------------------------------------
# Plain-JAX pieces (eval mode): transformer encoder, conv1d, batchnorm
# ---------------------------------------------------------------------------
def _leaky_relu(x, neg=0.01):
    return jnp.where(x >= 0, x, neg * x)


def _layer_norm(x, g, b, eps=1e-5):
    mu = jnp.mean(x, axis=-1, keepdims=True)
    var = jnp.mean((x - mu) ** 2, axis=-1, keepdims=True)
    return (x - mu) * jax.lax.rsqrt(var + eps) * g + b


def _mha(x, p, nhead):
    B, S, E = x.shape
    qkv = x @ p["w_in"].T + p["b_in"]
    q, k, v = jnp.split(qkv, 3, axis=-1)
    dh = E // nhead

    def heads(t):
        return t.reshape(B, S, nhead, dh).transpose(0, 2, 1, 3)

    q, k, v = heads(q), heads(k), heads(v)
    scores = jnp.einsum("bhqd,bhkd->bhqk", q, k) / math.sqrt(dh)
    attn = jax.nn.softmax(scores, axis=-1)
    o = jnp.einsum("bhqk,bhkd->bhqd", attn, v)
    o = o.transpose(0, 2, 1, 3).reshape(B, S, E)
    return o @ p["w_out"].T + p["b_out"]


def _encoder_layer(x, p, nhead):
    # PyTorch TransformerEncoderLayer defaults: norm_first=False, relu, dropout off (eval)
    x = _layer_norm(x + _mha(x, p["attn"], nhead), p["ln1_g"], p["ln1_b"])
    h = jax.nn.relu(x @ p["w1"].T + p["b1"]) @ p["w2"].T + p["b2"]
    return _layer_norm(x + h, p["ln2_g"], p["ln2_b"])


def _transformer_encoder(x, layers, nhead):
    for p in layers:
        x = _encoder_layer(x, p, nhead)
    return x


def _conv1d(x, w, b):
    # x: (B, Cin, L), w: (Cout, Cin, K), 'same' padding (K odd)
    K = w.shape[-1]
    pad = K // 2
    L = x.shape[-1]
    xp = jnp.pad(x, ((0, 0), (0, 0), (pad, pad)))
    y = jnp.zeros((x.shape[0], w.shape[0], L), dtype=x.dtype)
    for k in range(K):
        y = y + jnp.einsum("bil,oi->bol", xp[:, :, k:k + L], w[:, :, k])
    return y + b[None, :, None]


def _batchnorm1d(x, p, eps=1e-5):
    # eval mode (running stats); supports (B, C) and (B, C, L)
    shape = (1, -1) + (1,) * (x.ndim - 2)
    mean = p["mean"].reshape(shape)
    var = p["var"].reshape(shape)
    g = p["gamma"].reshape(shape)
    b = p["beta"].reshape(shape)
    return (x - mean) * jax.lax.rsqrt(var + eps) * g + b


def _conv_block(x, blocks):
    for blk in blocks:           # Conv1d -> BatchNorm1d -> LeakyReLU, twice
        x = _conv1d(x, blk["w"], blk["b"])
        x = _batchnorm1d(x, blk["bn"])
        x = _leaky_relu(x)
    return x


# Pure-JAX reference of the fused head (used only for correctness checking)
def _head_ref(p_flat, s_flat, params):
    lp, ls = params["lin_pattern"], params["lin_sequence"]
    yp = _leaky_relu(p_flat @ lp["w"] + lp["b"])
    ys = _leaky_relu(s_flat @ ls["w"] + ls["b"])
    e = jnp.concatenate([yp, ys], axis=1)
    e = _batchnorm1d(e, params["fc_bn"])
    for layer in params["fc"]:
        e = _leaky_relu(e @ layer["w"] + layer["b"])
    y = e @ params["out"]["w"] + params["out"]["b"]
    return jax.nn.log_softmax(y, axis=1)


# ---------------------------------------------------------------------------
# ModelConcat forward (eval mode; Dropout = identity)
# ---------------------------------------------------------------------------
def model_concat_forward(params, sequence, pattern, *, nhead=8):
    B = pattern.shape[0]

    # ----- pattern branch -----
    pattern_identity = pattern
    p = position_encoder_forward(pattern, params["pe_pattern"])            # Pallas
    p = _transformer_encoder(p, params["enc_pattern"], nhead)
    p = jnp.transpose(p, (0, 2, 1))
    p = _conv_block(p, params["conv_pattern"])
    p = jnp.transpose(p, (0, 2, 1))
    p = p + pattern_identity
    p = p.reshape(B, -1)                                                   # (B, 14*E)

    # ----- sequence branch -----
    sequence_identity = sequence
    s = position_encoder_forward(sequence, params["pe_sequence"])          # Pallas
    s = _transformer_encoder(s, params["enc_sequence"], nhead)
    s = jnp.transpose(s, (0, 2, 1))
    s = _conv_block(s, params["conv_sequence"])
    s = jnp.transpose(s, (0, 2, 1))
    s = s + sequence_identity
    s = s.reshape(B, -1)                                                   # (B, 200*E)

    # ----- fully-fused head: both linears + concat + bn-folded fc stack + log_softmax
    return fused_head(p, s, params)                                        # Pallas (1 call)


# ---------------------------------------------------------------------------
# Deterministic parameter construction
# ---------------------------------------------------------------------------
def init_params(key, *, embed_feature=32, ff=256, nlayers=3, hidden=64):
    E = embed_feature
    keys = iter(jax.random.split(key, 256))

    def w(shape, scale=0.02):
        return scale * jax.random.normal(next(keys), shape, dtype=jnp.float32)

    def enc_layer():
        return dict(
            attn=dict(w_in=w((3 * E, E)), b_in=jnp.zeros((3 * E,), jnp.float32),
                      w_out=w((E, E)), b_out=jnp.zeros((E,), jnp.float32)),
            ln1_g=jnp.ones((E,), jnp.float32), ln1_b=jnp.zeros((E,), jnp.float32),
            w1=w((ff, E)), b1=jnp.zeros((ff,), jnp.float32),
            w2=w((E, ff)), b2=jnp.zeros((E,), jnp.float32),   # FIX: bias of Linear(ff, E) is (E,)
            ln2_g=jnp.ones((E,), jnp.float32), ln2_b=jnp.zeros((E,), jnp.float32),
        )

    def conv_blk(k):
        return dict(w=w((E, E, k)), b=jnp.zeros((E,), jnp.float32),
                    bn=dict(mean=jnp.zeros((E,), jnp.float32),
                            var=jnp.ones((E,), jnp.float32),
                            gamma=jnp.ones((E,), jnp.float32),
                            beta=jnp.zeros((E,), jnp.float32)))

    def lin(i, o):
        return dict(w=w((i, o)), b=jnp.zeros((o,), jnp.float32))

    return dict(
        pe_pattern=make_pe(E, 14),
        pe_sequence=make_pe(E, 200),
        enc_pattern=[enc_layer() for _ in range(nlayers)],
        enc_sequence=[enc_layer() for _ in range(nlayers)],
        conv_pattern=[conv_blk(3), conv_blk(3)],
        conv_sequence=[conv_blk(5), conv_blk(5)],
        lin_pattern=lin(14 * E, hidden),
        lin_sequence=lin(200 * E, hidden),
        fc_bn=dict(mean=jnp.zeros((2 * hidden,), jnp.float32),
                   var=jnp.ones((2 * hidden,), jnp.float32),
                   gamma=jnp.ones((2 * hidden,), jnp.float32),
                   beta=jnp.zeros((2 * hidden,), jnp.float32)),
        fc=[lin(2 * hidden, 1024), lin(1024, 256), lin(256, 64), lin(64, 32)],
        out=lin(32, 14),
    )


# ---------------------------------------------------------------------------
# Test
# ---------------------------------------------------------------------------
if __name__ == "__main__":
    E = 32      # embed_feature (multiple of num_attn_head=8)
    B = 2

    key = jax.random.PRNGKey(0)
    k_par, k_seq, k_pat, k_p, k_s = jax.random.split(key, 5)

    params = init_params(k_par, embed_feature=E)
    sequence = jax.random.normal(k_seq, (B, 200, E), dtype=jnp.float32)
    pattern = jax.random.normal(k_pat, (B, 14, E), dtype=jnp.float32)

    # --- sanity-check the Pallas PositionEncoder kernel against pure JAX ---
    pe_out = jax.block_until_ready(position_encoder_forward(pattern, params["pe_pattern"]))
    pe_ref = pattern + params["pe_pattern"][:14, 0, :][None, :, :]
    assert jnp.allclose(pe_out, pe_ref, atol=1e-6), "PE kernel mismatch (pattern)"

    pe_out2 = jax.block_until_ready(position_encoder_forward(sequence, params["pe_sequence"]))
    pe_ref2 = sequence + params["pe_sequence"][:200, 0, :][None, :, :]
    assert jnp.allclose(pe_out2, pe_ref2, atol=1e-6), "PE kernel mismatch (sequence)"

    # --- sanity-check the fused head kernel (also validates the BN folding) ---
    p_flat = jax.random.normal(k_p, (B, 14 * E), dtype=jnp.float32)
    s_flat = jax.random.normal(k_s, (B, 200 * E), dtype=jnp.float32)
    head_out = jax.block_until_ready(fused_head(p_flat, s_flat, params))
    head_ref = _head_ref(p_flat, s_flat, params)
    assert jnp.allclose(head_out, head_ref, atol=1e-3), (
        "fused head mismatch, max abs err = %g" % float(jnp.max(jnp.abs(head_out - head_ref))))

    # --- full ModelConcat forward (eval mode) ---
    fwd = jax.jit(partial(model_concat_forward, nhead=8))
    out = jax.block_until_ready(fwd(params, sequence, pattern))

    assert out.shape == (B, 14), out.shape
    assert bool(jnp.all(jnp.isfinite(out)))
    row_sums = jnp.sum(jnp.exp(out), axis=1)          # log-softmax rows -> probs sum to 1
    assert jnp.allclose(row_sums, jnp.ones((B,)), atol=1e-3), row_sums

    print("KERNEL_OK")
</pallas_src>

<mosaic_0001>
module attributes {stable_mosaic.version = 11 : i64} {
  func.func @_pe_add_kernel(%arg0: memref<2x14x32xf32, #tpu.memory_space<vmem>>, %arg1: memref<14x32xf32, #tpu.memory_space<vmem>>, %arg2: memref<2x14x32xf32, #tpu.memory_space<vmem>>) attributes {dimension_semantics = [], scalar_prefetch = 0 : i64, scratch_operands = 0 : i64, tpu.core_type = #tpu.core_type<tc>} {
    %c0 = arith.constant 0 : index
    %c0_0 = arith.constant 0 : index
    %c0_1 = arith.constant 0 : index
    %0 = vector.load %arg0[%c0, %c0_0, %c0_1] : memref<2x14x32xf32, #tpu.memory_space<vmem>>, vector<2x14x32xf32>
    %c0_2 = arith.constant 0 : index
    %c0_3 = arith.constant 0 : index
    %1 = vector.load %arg1[%c0_2, %c0_3] : memref<14x32xf32, #tpu.memory_space<vmem>>, vector<14x32xf32>
    %2 = vector.shape_cast %1 : vector<14x32xf32> to vector<1x14x32xf32>
    %3 = vector.broadcast %2 : vector<1x14x32xf32> to vector<2x14x32xf32>
    %4 = arith.addf %0, %3 : vector<2x14x32xf32>
    %c0_4 = arith.constant 0 : index
    %c0_5 = arith.constant 0 : index
    %c0_6 = arith.constant 0 : index
    %5 = vector.load %arg2[%c0_4, %c0_5, %c0_6] : memref<2x14x32xf32, #tpu.memory_space<vmem>>, vector<2x14x32xf32>
    tpu.vector_store %arg2[%c0_4, %c0_5, %c0_6], %4 {strides = array<i32>} : memref<2x14x32xf32, #tpu.memory_space<vmem>>, vector<2x14x32xf32>,
    return
  }
}

</mosaic_0001>

<llo_original>
// kernel: tpu_custom_call.1
$region0: #{tpu_custom_call.1}
  #allocation0 [shape = 'u32[]', space=smem, size = 0x4, offset = 0x4, fixed_abs, tag = 'smem constant byte address 0x4 - core index']
  #allocation1 [shape = 'u32[144,128]{1,0:T(1,128)}', space=vmem, size = 0x12000, scoped, tag = 'internal scratch']
  %s0 = inlined_call_operand.vmem [shape: f32[2,14,32], index: 0, kind: input, shape index: {}]
  %s1 = inlined_call_operand.vmem [shape: f32[14,32], index: 1, kind: input, shape index: {}]
  %s2 = inlined_call_operand.vmem [shape: f32[2,14,32], index: 2, kind: output, shape index: {}]
  %s3 = sld [smem:[#allocation0]]
  $region18: #{tpu_custom_call.1} parent=0
    _
  %s5 = ssub.s32 1, %s3
  %s6 = scalar_select 0, %s5, %s3
  // Predicated region
  $region2: #{tpu_custom_call.1} parent=0 // pred_check
    _
  $region3: #{tpu_custom_call.1} parent=0 // pred_check_branch
    %8 = sbr.rel (0) target = $region5
  $region4: #{tpu_custom_call.1} parent=0 // pred_region
    _
  $region5: #{tpu_custom_call.1} parent=0 // pred_fallthru
    _
  // Predicated region
  $region6: #{tpu_custom_call.1} parent=0 // pred_check
    _
  $region7: #{tpu_custom_call.1} parent=0 // pred_check_branch
    %10 = sbr.rel (0) target = $region9
  $region8: #{tpu_custom_call.1} parent=0 // pred_region
    _
  $region9: #{tpu_custom_call.1} parent=0 // pred_fallthru
    _
  %v11 = vld [vmem:[%s0] sm:$0xff]
  %v12 = vld [vmem:[%s0 + $0x8] sm:$0x3f]
  %v13 = vld [vmem:[%s0 + $0x10] sm:$0xff]
  %v14 = vld [vmem:[%s0 + $0x18] sm:$0x3f]
  %v15 = vld [vmem:[%s1] sm:$0xff]
  %v16 = vld [vmem:[%s1 + $0x8] sm:$0x3f]
  %v17 = vadd.f32 %v11, %v15
  %v18 = vadd.f32 %v12, %v16
  %v19 = vadd.f32 %v13, %v15
  %v20 = vadd.f32 %v14, %v16
  %vm21 = vcmask 261120
  %22 = vst.msk [vmem:[%s2] sm:$0xff] %vm21, %v17
  %vm23 = vcmask 259072
  %24 = vst.msk [vmem:[%s2 + $0x8] sm:$0x3f] %vm23, %v18
  %25 = vst.msk [vmem:[%s2 + $0x10] sm:$0xff] %vm21, %v19
  %26 = vst.msk [vmem:[%s2 + $0x18] sm:$0x3f] %vm23, %v20
  // Predicated region
  $region10: #{tpu_custom_call.1} parent=0 // pred_check
    _
  $region11: #{tpu_custom_call.1} parent=0 // pred_check_branch
    %28 = sbr.rel (0) target = $region13
  $region12: #{tpu_custom_call.1} parent=0 // pred_region
    _
  $region13: #{tpu_custom_call.1} parent=0 // pred_fallthru
    _
  // Predicated region
  $region14: #{tpu_custom_call.1} parent=0 // pred_check
    _
  $region15: #{tpu_custom_call.1} parent=0 // pred_check_branch
    %30 = sbr.rel (0) target = $region17
  $region16: #{tpu_custom_call.1} parent=0 // pred_region
    _
  $region17: #{tpu_custom_call.1} parent=0 // pred_fallthru
    _

</llo_original>
